<compile_context>
chip_gen: v7x
topology: tpu7x:2x2x1
jax: 0.10.0
libtpu: 0.0.40
codegen_flags: <defaults>
</compile_context>

<pallas_src>
import functools
import math

import jax
import jax.numpy as jnp
from jax import lax
from jax.experimental import pallas as pl
from jax.experimental.pallas import tpu as pltpu

_LANE = 128


def _round_up(x, m):
    return (x + m - 1) // m * m


# --------------------------------------------------------------------------
# One-time weight preparation (transpose / pad / fold alpha into a pad lane).
# --------------------------------------------------------------------------
def prepare_params(params, compute_dtype=jnp.bfloat16):
    phi = jnp.asarray(params["phi"], jnp.float32)              # (H, I)
    hw = jnp.asarray(params["hidden_weights"], jnp.float32)    # (H, H)
    bias = jnp.asarray(params["bias"], jnp.float32)            # (H,)
    aw = jnp.asarray(params["alpha_w"], jnp.float32)           # (1, I+H)
    ab = jnp.asarray(params["alpha_b"], jnp.float32)           # (1,)

    H, I = phi.shape
    Hp = _round_up(H, _LANE)
    if Hp > H:
        W, alpha_lane = Hp, H            # fold alpha into an existing pad lane
    else:
        W, alpha_lane = Hp + _LANE, Hp   # H is a multiple of 128: append block

    wx = jnp.zeros((I, W), jnp.float32)
    wx = wx.at[:, :H].set(phi.T)
    wx = wx.at[:, alpha_lane].set(aw[0, :I])

    wh = jnp.zeros((Hp, W), jnp.float32)
    wh = wh.at[:H, :H].set(hw.T)
    wh = wh.at[:H, alpha_lane].set(aw[0, I:])
    # NOTE: wh rows >= H are exactly zero, so the alpha value that ends up in
    # lane `alpha_lane` of the carried hidden state contributes nothing.

    b = jnp.zeros((1, W), jnp.float32)
    b = b.at[0, :H].set(bias)
    b = b.at[0, alpha_lane].set(ab[0])

    return {
        "wx": wx.astype(compute_dtype),
        "wh": wh.astype(compute_dtype),
        "bias": b,                       # bias / alpha bias stay f32
        "H": H, "I": I, "Hp": Hp, "W": W, "alpha_lane": alpha_lane,
    }


# --------------------------------------------------------------------------
# Kernel 1: input projection  xproj = x @ wx + bias   (non-recurrent, hoisted)
# --------------------------------------------------------------------------
def _proj_kernel(x_ref, wx_ref, bias_ref, out_ref):
    out_ref[...] = (
        jnp.dot(x_ref[...], wx_ref[...], preferred_element_type=jnp.float32)
        + bias_ref[...]
    )


def _project_inputs(x2d, wx, bias):
    """x2d: (M, I) -> (M, W) float32, one lane-dense matmul over M = T*B rows."""
    M, I = x2d.shape
    W = wx.shape[1]
    mt = 512
    Mp = _round_up(M, 8)
    if Mp <= mt:
        mt = Mp
    else:
        Mp = _round_up(Mp, mt)
    xp = x2d.astype(wx.dtype)
    if Mp != M:
        xp = jnp.pad(xp, ((0, Mp - M), (0, 0)))

    out = pl.pallas_call(
        _proj_kernel,
        out_shape=jax.ShapeDtypeStruct((Mp, W), jnp.float32),
        grid=(Mp // mt,),
        in_specs=[
            pl.BlockSpec((mt, I), lambda m: (m, 0)),
            pl.BlockSpec((I, W), lambda m: (0, 0)),
            pl.BlockSpec((1, W), lambda m: (0, 0)),
        ],
        out_specs=pl.BlockSpec((mt, W), lambda m: (m, 0)),
        compiler_params=pltpu.CompilerParams(dimension_semantics=("parallel",)),
    )(xp, wx, bias)
    return out[:M]


# --------------------------------------------------------------------------
# Kernel 2: the recurrence.  One grid step = `tb` timesteps of one batch block.
# --------------------------------------------------------------------------
def _alphat_recurrent_kernel(xp_ref,      # (tb, bb, W)  f32  x-projection block
                             h0_ref,      # (bb, Hp)     f32  initial hidden
                             sh0_ref,     # (bb, Hp)     f32  initial smoothed
                             wh_ref,      # (Hp, W)      cdt  fused hidden weights (resident)
                             fused_ref,   # (tb, bb, W)  out: h_hat in [:H], alpha at alpha_lane
                             smooth_ref,  # (tb, bb, Hp) out: smoothed hidden (padded)
                             h_st,        # VMEM (bb, Hp) f32 carried hidden state
                             sh_st,       # VMEM (bb, Hp) f32 carried smoothed state
                             *, tb, hp, alpha_lane):
    t_blk = pl.program_id(1)

    @pl.when(t_blk == 0)
    def _():
        h_st[...] = h0_ref[...]
        sh_st[...] = sh0_ref[...]

    wh = wh_ref[...]          # hoisted out of the unrolled loop (resident weight)
    cdt = wh.dtype

    def step(t, carry):
        h = h_st[...]                                            # (bb, Hp) f32
        sh = sh_st[...]                                          # (bb, Hp) f32
        fused = xp_ref[t] + jnp.dot(h.astype(cdt), wh,
                                    preferred_element_type=jnp.float32)
        alpha = fused[:, alpha_lane:alpha_lane + 1]              # (bb, 1) f32
        smooth = sh + alpha * (h - sh)                           # f32 blend
        fused_ref[t] = fused.astype(fused_ref.dtype)
        smooth_ref[t] = smooth.astype(smooth_ref.dtype)
        # Recurrence (see module-level TODO): hidden <- h_hat, smoothed <- smoothed_h.
        h_st[...] = fused[:, :hp]
        sh_st[...] = smooth
        return carry

    lax.fori_loop(0, tb, step, 0, unroll=True)


# --------------------------------------------------------------------------
# Wrappers.
# --------------------------------------------------------------------------
def alphat_rnn_sequence(xs, hidden0, smoothed0, prep, *,
                        time_block=8, batch_block=None,
                        out_dtype=jnp.float32):
    """xs: (T, B, I); hidden0, smoothed0: (B, H).

    Returns (h_hat_seq (T,B,H), smoothed_seq (T,B,H), alpha_seq (T,B,1)).
    """
    T, B, I = xs.shape
    H, Hp, W, al = prep["H"], prep["Hp"], prep["W"], prep["alpha_lane"]
    assert I == prep["I"]

    bb = B if batch_block is None else batch_block
    min_sub = 16 if jnp.dtype(out_dtype).itemsize == 2 else 8
    assert B % bb == 0 and (bb == B or bb % min_sub == 0), "bad batch_block"
    nb = B // bb

    tb = min(time_block, T)
    Tp = _round_up(T, tb)
    nt = Tp // tb

    # Non-recurrent input projection (x-side matmul + bias + alpha_x + alpha_b),
    # hoisted out of the recurrence as one (T*B, I) @ (I, W) Pallas matmul.
    xproj = _project_inputs(xs.reshape(T * B, I), prep["wx"], prep["bias"])
    xproj = xproj.reshape(T, B, W)
    if Tp != T:
        xproj = jnp.pad(xproj, ((0, Tp - T), (0, 0), (0, 0)))

    pad = Hp - H
    h0 = jnp.pad(hidden0.astype(jnp.float32), ((0, 0), (0, pad)))
    sh0 = jnp.pad(smoothed0.astype(jnp.float32), ((0, 0), (0, pad)))

    kernel = functools.partial(_alphat_recurrent_kernel, tb=tb, hp=Hp, alpha_lane=al)

    fused_seq, smooth_seq = pl.pallas_call(
        kernel,
        out_shape=(
            jax.ShapeDtypeStruct((Tp, B, W), out_dtype),
            jax.ShapeDtypeStruct((Tp, B, Hp), out_dtype),
        ),
        grid=(nb, nt),                                       # (batch, time)
        in_specs=[
            pl.BlockSpec((tb, bb, W), lambda b, t: (t, b, 0)),   # xproj block (streamed)
            pl.BlockSpec((bb, Hp), lambda b, t: (b, 0)),         # h0 (read at t==0)
            pl.BlockSpec((bb, Hp), lambda b, t: (b, 0)),         # sh0 (read at t==0)
            pl.BlockSpec((Hp, W), lambda b, t: (0, 0)),          # wh (resident)
        ],
        out_specs=[
            pl.BlockSpec((tb, bb, W), lambda b, t: (t, b, 0)),   # lane-dense fused slab
            pl.BlockSpec((tb, bb, Hp), lambda b, t: (t, b, 0)),  # lane-dense smoothed slab
        ],
        scratch_shapes=[
            pltpu.VMEM((bb, Hp), jnp.float32),               # hidden state
            pltpu.VMEM((bb, Hp), jnp.float32),               # smoothed hidden state
        ],
        compiler_params=pltpu.CompilerParams(
            dimension_semantics=("parallel", "arbitrary"),   # batch parallel, time sequential
        ),
    )(xproj, h0, sh0, prep["wh"])

    h_hat_seq = fused_seq[:T, :, :H]
    alpha_seq = fused_seq[:T, :, al:al + 1]
    smoothed_seq = smooth_seq[:T, :, :H]
    return h_hat_seq, smoothed_seq, alpha_seq


def alphat_rnn_cell(x, hidden, smoothed_hidden, prep, out_dtype=jnp.float32):
    """Exact equivalent of AlphatRNNCell.forward (single step)."""
    h_seq, s_seq, a_seq = alphat_rnn_sequence(
        x[None], hidden, smoothed_hidden, prep, out_dtype=out_dtype)
    return h_seq[0], s_seq[0], a_seq[0]


# --------------------------------------------------------------------------
# Init mirroring PyTorch reset_parameters(), and a pure-JAX reference.
# --------------------------------------------------------------------------
def init_params(key, input_size, hidden_size):
    k1, k2, k3, k4 = jax.random.split(key, 4)
    b_phi = math.sqrt(6.0 / input_size)                       # kaiming_uniform_(a=0)
    phi = jax.random.uniform(k1, (hidden_size, input_size), jnp.float32, -b_phi, b_phi)
    b_hw = math.sqrt(6.0 / hidden_size)
    hw = jax.random.uniform(k2, (hidden_size, hidden_size), jnp.float32, -b_hw, b_hw)
    bias = jnp.zeros((hidden_size,), jnp.float32)
    fan_in = input_size + hidden_size
    b_aw = math.sqrt(6.0 / (fan_in + 1))                      # xavier_uniform_
    alpha_w = jax.random.uniform(k3, (1, fan_in), jnp.float32, -b_aw, b_aw)
    b_ab = 1.0 / math.sqrt(fan_in)                            # nn.Linear default bias
    alpha_b = jax.random.uniform(k4, (1,), jnp.float32, -b_ab, b_ab)
    return {"phi": phi, "hidden_weights": hw, "bias": bias,
            "alpha_w": alpha_w, "alpha_b": alpha_b}


def reference_cell(x, hidden, smoothed_hidden, params, compute_dtype=jnp.float32):
    """Pure-JAX mirror of the PyTorch forward; compute_dtype emulates the
    kernel's operand precision (f32 accumulation either way)."""
    cdt = compute_dtype
    combined = jnp.concatenate([x, hidden], axis=1)
    alpha = jnp.dot(combined.astype(cdt), params["alpha_w"].astype(cdt).T,
                    preferred_element_type=jnp.float32) + params["alpha_b"]
    h_hat = (
        jnp.dot(x.astype(cdt), params["phi"].astype(cdt).T,
                preferred_element_type=jnp.float32)
        + jnp.dot(hidden.astype(cdt), params["hidden_weights"].astype(cdt).T,
                  preferred_element_type=jnp.float32)
        + params["bias"]
    )
    smoothed = alpha * hidden + (1.0 - alpha) * smoothed_hidden
    return h_hat, smoothed, alpha


def _close(got, want, tol):
    got = jnp.asarray(got, jnp.float32)
    want = jnp.asarray(want, jnp.float32)
    scale = max(float(jnp.max(jnp.abs(want))), 1.0)
    return float(jnp.max(jnp.abs(got - want))) <= tol * scale


if __name__ == "__main__":
    B, I, H, T = 32, 16, 32, 8
    key = jax.random.PRNGKey(0)
    kp, kx, kh, ks, kxs = jax.random.split(key, 5)

    params = init_params(kp, I, H)
    x = jax.random.normal(kx, (B, I), jnp.float32)
    hidden = jax.random.normal(kh, (B, H), jnp.float32)
    smoothed_hidden = jax.random.normal(ks, (B, H), jnp.float32)

    # 1) Exact-semantics check: f32-compute kernel, f32 outputs, vs reference.
    prep_f32 = prepare_params(params, compute_dtype=jnp.float32)
    h_hat, sm, al = alphat_rnn_cell(x, hidden, smoothed_hidden, prep_f32)
    jax.block_until_ready((h_hat, sm, al))
    r_h, r_s, r_a = reference_cell(x, hidden, smoothed_hidden, params, jnp.float32)
    assert h_hat.shape == (B, H) and sm.shape == (B, H) and al.shape == (B, 1)
    assert _close(h_hat, r_h, 1e-4)
    assert _close(sm, r_s, 1e-4)
    assert _close(al, r_a, 1e-4)

    # 2) Optimized bf16-weight path (f32 outputs) vs a matched-precision reference.
    prep_bf16 = prepare_params(params, compute_dtype=jnp.bfloat16)
    h_b, s_b, a_b = alphat_rnn_cell(x, hidden, smoothed_hidden, prep_bf16)
    jax.block_until_ready((h_b, s_b, a_b))
    r_h, r_s, r_a = reference_cell(x, hidden, smoothed_hidden, params, jnp.bfloat16)
    assert _close(h_b, r_h, 2e-3)
    assert _close(s_b, r_s, 2e-3)
    assert _close(a_b, r_a, 2e-3)

    # 3) Multi-step sequence: time-blocked grid (2 time blocks), batch-parallel
    #    axis (2 batch blocks), bf16 compute, bf16 output slabs; vs a Python
    #    loop of matched-precision references with the same recurrence.
    xs = jax.random.normal(kxs, (T, B, I), jnp.float32)
    hs, ss, als = alphat_rnn_sequence(xs, hidden, smoothed_hidden, prep_bf16,
                                      time_block=4, batch_block=16,
                                      out_dtype=jnp.bfloat16)
    jax.block_until_ready((hs, ss, als))
    assert hs.shape == (T, B, H) and ss.shape == (T, B, H) and als.shape == (T, B, 1)
    h_r, s_r = hidden, smoothed_hidden
    for t in range(T):
        rh, rs, ra = reference_cell(xs[t], h_r, s_r, params, jnp.bfloat16)
        assert _close(hs[t], rh, 3e-2)
        assert _close(ss[t], rs, 3e-2)
        assert _close(als[t], ra, 3e-2)
        h_r, s_r = rh, rs

    print("KERNEL_OK")
</pallas_src>

<mosaic_0001>
module attributes {stable_mosaic.version = 11 : i64} {
  func.func @_proj_kernel(%arg0: i32, %arg1: memref<32x16xf32, #tpu.memory_space<vmem>>, %arg2: memref<16x128xf32, #tpu.memory_space<vmem>>, %arg3: memref<1x128xf32, #tpu.memory_space<vmem>>, %arg4: memref<32x128xf32, #tpu.memory_space<vmem>>) attributes {dimension_semantics = [#tpu.dimension_semantics<parallel>], iteration_bounds = array<i64: 1>, scalar_prefetch = 0 : i64, scratch_operands = 0 : i64, tpu.core_type = #tpu.core_type<tc>, window_params = [{transform_indices = @transform_0, window_bounds = array<i64: 32, 16>}, {pipeline_mode = #tpu.pipeline_mode<synchronous>, transform_indices = @transform_1, window_bounds = array<i64: 16, 128>}, {pipeline_mode = #tpu.pipeline_mode<synchronous>, transform_indices = @transform_2, window_bounds = array<i64: 1, 128>}, {transform_indices = @transform_3, window_bounds = array<i64: 32, 128>}]} {
    %c0 = arith.constant 0 : index
    %c0_0 = arith.constant 0 : index
    %0 = vector.load %arg1[%c0, %c0_0] : memref<32x16xf32, #tpu.memory_space<vmem>>, vector<32x16xf32>
    %c0_1 = arith.constant 0 : index
    %c0_2 = arith.constant 0 : index
    %1 = vector.load %arg2[%c0_1, %c0_2] : memref<16x128xf32, #tpu.memory_space<vmem>>, vector<16x128xf32>
    %cst = arith.constant dense<0.000000e+00> : vector<32x128xf32>
    %2 = tpu.matmul %0, %1, %cst {dimension_numbers = #tpu.dot_dimension_numbers<[1], [0], [0], [1], [0, 0, 1, 1], [], []>} : vector<32x16xf32>, vector<16x128xf32>, vector<32x128xf32> -> vector<32x128xf32>
    %c0_3 = arith.constant 0 : index
    %c0_4 = arith.constant 0 : index
    %3 = vector.load %arg3[%c0_3, %c0_4] : memref<1x128xf32, #tpu.memory_space<vmem>>, vector<1x128xf32>
    %4 = vector.broadcast %3 : vector<1x128xf32> to vector<32x128xf32>
    %5 = arith.addf %2, %4 : vector<32x128xf32>
    %c0_5 = arith.constant 0 : index
    %c0_6 = arith.constant 0 : index
    %6 = vector.load %arg4[%c0_5, %c0_6] : memref<32x128xf32, #tpu.memory_space<vmem>>, vector<32x128xf32>
    tpu.vector_store %arg4[%c0_5, %c0_6], %5 {strides = array<i32>} : memref<32x128xf32, #tpu.memory_space<vmem>>, vector<32x128xf32>,
    return
  }
  func.func @transform_0(%arg0: i32) -> (i32, i32) {
    %c0_i32 = arith.constant 0 : i32
    %c0_i32_0 = arith.constant 0 : i32
    return %arg0, %c0_i32 : i32, i32
  }
  func.func @transform_1(%arg0: i32) -> (i32, i32) {
    %c0_i32 = arith.constant 0 : i32
    %c0_i32_0 = arith.constant 0 : i32
    %c0_i32_1 = arith.constant 0 : i32
    return %c0_i32, %c0_i32_0 : i32, i32
  }
  func.func @transform_2(%arg0: i32) -> (i32, i32) {
    %c0_i32 = arith.constant 0 : i32
    %c0_i32_0 = arith.constant 0 : i32
    %c0_i32_1 = arith.constant 0 : i32
    return %c0_i32, %c0_i32_0 : i32, i32
  }
  func.func @transform_3(%arg0: i32) -> (i32, i32) {
    %c0_i32 = arith.constant 0 : i32
    %c0_i32_0 = arith.constant 0 : i32
    return %arg0, %c0_i32 : i32, i32
  }
}

</mosaic_0001>

<llo_original>
// kernel: tpu_custom_call.1
$region0: #{tpu_custom_call.1}
  #allocation0 [shape = 'u32[]', space=smem, size = 0x4, offset = 0x4, fixed_abs, tag = 'smem constant byte address 0x4 - core index']
  #allocation1 [shape = 'u32[144,128]{1,0:T(1,128)}', space=vmem, size = 0x12000, scoped, tag = 'internal scratch']
  %s0 = inlined_call_operand.vmem [shape: f32[32,16], index: 0, kind: input, shape index: {}]
  %s1 = inlined_call_operand.vmem [shape: f32[16,128], index: 1, kind: input, shape index: {}]
  %s2 = inlined_call_operand.vmem [shape: f32[1,128], index: 2, kind: input, shape index: {}]
  %s3 = inlined_call_operand.hbm [shape: f32[32,128], index: 3, kind: output, shape index: {}]
  %s4 = sld [smem:[#allocation0]]
  $region22: #{tpu_custom_call.1} parent=0
    _
  %s6 = ssub.s32 1, %s4
  %s7 = scalar_select 0, %s6, %s4
  $region1: #{tpu_custom_call.1} parent=0
    #allocation2 [shape = 'u8[16384]{0}', space=vmem, size = 0x4000, scoped, tag = 'output window, operand 0, single buffered']
    #allocation3 [shape = 's32[1]{0}', space=sflag, size = 0x4, scoped, tag = 'scoped memory for tpu_custom_call.1']
    %8 = vsyncpa [#allocation3], 0
    // Predicated region
    $region2: #{tpu_custom_call.1} parent=1 // pred_check
      _
    $region3: #{tpu_custom_call.1} parent=1 // pred_check_branch
      %10 = sbr.rel (0) target = $region5
    $region4: #{tpu_custom_call.1} parent=1 // pred_region
      _
    $region5: #{tpu_custom_call.1} parent=1 // pred_fallthru
      _
    // Predicated region
    $region6: #{tpu_custom_call.1} parent=1 // pred_check
      _
    $region7: #{tpu_custom_call.1} parent=1 // pred_check_branch
      %12 = sbr.rel (0) target = $region9
    $region8: #{tpu_custom_call.1} parent=1 // pred_region
      _
    $region9: #{tpu_custom_call.1} parent=1 // pred_fallthru
      _
    // Predicated region
    $region10: #{tpu_custom_call.1} parent=1 // pred_check
      _
    $region11: #{tpu_custom_call.1} parent=1 // pred_check_branch
      %14 = sbr.rel (0) target = $region13
    $region12: #{tpu_custom_call.1} parent=1 // pred_region
      _
    $region13: #{tpu_custom_call.1} parent=1 // pred_fallthru
      _
    %v15 = vld [vmem:[%s0] sm:$0xff]
    %v16 = vld [vmem:[%s0 + $0x8] sm:$0xff]
    %v17 = vld [vmem:[%s0 + $0x10] sm:$0xff]
    %v18 = vld [vmem:[%s0 + $0x18] sm:$0xff]
    %v19 = vld [vmem:[%s1] sm:$0xff]
    %v20 = vld [vmem:[%s1 + $0x8] sm:$0xff]
    %v21 = vld [vmem:[%s2] sm:$0x1]
    %v23 = vlaneseq
    %v24 = vshrl.u32 %v23, 7
    %v25 = vsub.s32 0, %v24
    %v26 = vrot.slane %v21, %v25
    %vm28 = vcmask 130048
    %v30 = vsel %vm28, %v15, 0
    %v33 = vsel %vm28, %v16, 0
    %v36 = vsel %vm28, %v17, 0
    %v39 = vsel %vm28, %v18, 0
    %41 = vmatprep.subr.mxu0 0.0
    %42 = vmatpush1.msra.mxu0 %v19
    %43 = vmatprep.subr.mxu0 0.0
    %44 = vmatpush1.msra.mxu0 %v20
    %45 = vmatprep.subr.mxu0 0.0
    %46 = vmatpush1.msra.mxu0 0.0
    %47 = vmatprep.subr.mxu0 0.0
    %48 = vmatpush1.msra.mxu0 0.0
    %49 = vmatprep.subr.mxu0 0.0
    %50 = vmatpush1.msra.mxu0 0.0
    %51 = vmatprep.subr.mxu0 0.0
    %52 = vmatpush1.msra.mxu0 0.0
    %53 = vmatprep.subr.mxu0 0.0
    %54 = vmatpush1.msra.mxu0 0.0
    %55 = vmatprep.subr.mxu0 0.0
    %56 = vmatpush1.msra.mxu0 0.0
    %57 = vmatprep.subr.mxu0 0.0
    %58 = vmatpush1.msra.mxu0 0.0
    %59 = vmatprep.subr.mxu0 0.0
    %60 = vmatpush1.msra.mxu0 0.0
    %61 = vmatprep.subr.mxu0 0.0
    %62 = vmatpush1.msra.mxu0 0.0
    %63 = vmatprep.subr.mxu0 0.0
    %64 = vmatpush1.msra.mxu0 0.0
    %65 = vmatprep.subr.mxu0 0.0
    %66 = vmatpush1.msra.mxu0 0.0
    %67 = vmatprep.subr.mxu0 0.0
    %68 = vmatpush1.msra.mxu0 0.0
    %69 = vmatprep.subr.mxu0 0.0
    %70 = vmatpush1.msra.mxu0 0.0
    %71 = vmatprep.subr.mxu0 0.0
    %72 = vmatpush1.msra.mxu0 0.0
    %73 = vmatprep.subr.mxu0 0.0
    %74 = vmatpush1.msra.mxu0 0.0
    %75 = vmatprep.subr.mxu0 0.0
    %76 = vmatpush1.msra.mxu0 0.0
    %77 = vmatprep.subr.mxu0 0.0
    %78 = vmatpush1.msra.mxu0 0.0
    %79 = vmatprep.subr.mxu0 0.0
    %80 = vmatpush1.msra.mxu0 0.0
    %81 = vmatprep.subr.mxu0 0.0
    %82 = vmatpush1.msra.mxu0 0.0
    %83 = vmatprep.subr.mxu0 0.0
    %84 = vmatpush1.msra.mxu0 0.0
    %85 = vmatprep.subr.mxu0 0.0
    %86 = vmatpush1.msra.mxu0 0.0
    %87 = vmatprep.subr.mxu0 0.0
    %88 = vmatpush1.msra.mxu0 0.0
    %89 = vmatprep.subr.mxu0 0.0
    %90 = vmatpush1.msra.mxu0 0.0
    %91 = vmatprep.subr.mxu0 0.0
    %92 = vmatpush1.msra.mxu0 0.0
    %93 = vmatprep.subr.mxu0 0.0
    %94 = vmatpush1.msra.mxu0 0.0
    %95 = vmatprep.subr.mxu0 0.0
    %96 = vmatpush1.msra.mxu0 0.0
    %97 = vmatprep.subr.mxu0 0.0
    %98 = vmatpush1.msra.mxu0 0.0
    %99 = vmatprep.subr.mxu0 0.0
    %100 = vmatpush1.msra.mxu0 0.0
    %101 = vmatprep.subr.mxu0 0.0
    %102 = vmatpush1.msra.mxu0 0.0
    %103 = vmatprep.subr.mxu0 0.0
    %104 = vmatpush1.msra.mxu0 0.0
    %105 = vmatprep.mubr.f32.mxu0 0.0
    %106 = vmatmul.mubr.f32.gmra.mrb[0].mxu0 %v30
    %v107 = vpop.f32.mrb[0].mxu0
    %v108 = vadd.f32 %v26, %v107
    %v109 = vpop.f32.mrb[0].mxu0
    %110 = vmatprep.mubr.f32.mxu0 0.0
    %111 = vmatmul.mubr.f32.gmra.mrb[0].mxu0 %v33
    %v112 = vpop.f32.mrb[0].mxu0
    %v113 = vadd.f32 %v26, %v112
    %v114 = vpop.f32.mrb[0].mxu0
    %115 = vmatprep.mubr.f32.mxu0 0.0
    %116 = vmatmul.mubr.f32.gmra.mrb[0].mxu0 %v36
    %v117 = vpop.f32.mrb[0].mxu0
    %v118 = vadd.f32 %v26, %v117
    %v119 = vpop.f32.mrb[0].mxu0
    %120 = vmatprep.mubr.f32.mxu0 0.0
    %121 = vmatmul.mubr.f32.gmra.mrb[0].mxu0 %v39
    %v122 = vpop.f32.mrb[0].mxu0
    %v123 = vadd.f32 %v26, %v122
    %v124 = vpop.f32.mrb[0].mxu0
    %125 = vdwg.mxu0
    %126 = vst [vmem:[#allocation2] sm:$0xff] %v108
    %127 = vst [vmem:[#allocation2 + $0x8] sm:$0xff] %v113
    %128 = vst [vmem:[#allocation2 + $0x10] sm:$0xff] %v118
    %129 = vst [vmem:[#allocation2 + $0x18] sm:$0xff] %v123
    // Predicated region
    $region14: #{tpu_custom_call.1} parent=1 // pred_check
      _
    $region15: #{tpu_custom_call.1} parent=1 // pred_check_branch
      %131 = sbr.rel (0) target = $region17
    $region16: #{tpu_custom_call.1} parent=1 // pred_region
      %s133 = ssub.s32 512, 512
      %134 = vsyncadd [#allocation3], %s133
      %s135 = sshll.u32 [#allocation2], 4
      %s136 = int_to_ptr.vmem [resolvable:$true] %s135
      %141 = dma.vmem_to_hbm [thread:$0]  %s136, 512, %s3, [#allocation3], 128, 128, 8
    $region17: #{tpu_custom_call.1} parent=1 // pred_fallthru
      _
    // Predicated region
    $region18: #{tpu_custom_call.1} parent=1 // pred_check
      _
    $region19: #{tpu_custom_call.1} parent=1 // pred_check_branch
      %143 = sbr.rel (0) target = $region21
    $region20: #{tpu_custom_call.1} parent=1 // pred_region
      %144 = dma.done [#allocation3], 512
    $region21: #{tpu_custom_call.1} parent=1 // pred_fallthru
      _
    %145 = vsyncpa [#allocation3], 1

</llo_original>
